<compile_context>
chip_gen: v5e
topology: v5e:2x2
jax: 0.10.0
libtpu: 0.0.40
codegen_flags: <defaults>
</compile_context>

<pallas_src>
import jax
import jax.numpy as jnp
from jax.experimental import pallas as pl
from jax.experimental.pallas import tpu as pltpu


def _attention_kernel(xs_ref, xt_ref, wq_ref, wkv_ref, bias_ref, out_ref):
    """All B batches in one step: fused Q / [K|V] projections + attention.

    The 1/sqrt(H) scale is pre-folded into wq / bq, so scores need no extra
    per-call multiply.
    """
    B, N, H = xs_ref.shape

    bias = bias_ref[...]                    # (2, 2H): row0[:H]=bq*s, row1=[bk|bv]
    bq = bias[0:1, :H]                      # (1, H)
    bkv = bias[1:2, :]                      # (1, 2H)

    # Projections as one (B*N, .) matmul each -- single MXU pass, f32 acc.
    xs2 = xs_ref[...].reshape(B * N, H)     # (B*N, H)
    xt2 = xt_ref[...].reshape(B * N, 2 * H) # (B*N, 2H)
    q = (jnp.dot(xs2, wq_ref[...], preferred_element_type=jnp.float32)
         + bq).reshape(B, N, H)
    kv = jnp.dot(xt2, wkv_ref[...], preferred_element_type=jnp.float32) + bkv
    k = kv[:, :H].reshape(B, N, H)
    v = kv[:, H:].reshape(B, N, H)

    # Batched scaled-dot-product attention (scale already baked into q).
    scores = jnp.einsum("bnh,bmh->bnm", q, k,
                        preferred_element_type=jnp.float32)      # (B, N, N)

    # Numerically stable softmax along the key axis, exact f32 divide.
    m = jnp.max(scores, axis=-1, keepdims=True)
    e = jnp.exp(scores - m)
    denom = jnp.sum(e, axis=-1, keepdims=True)
    attn = e / denom

    out = jnp.einsum("bnm,bmh->bnh", attn, v,
                     preferred_element_type=jnp.float32)         # (B, N, H)
    out_ref[...] = out.astype(out_ref.dtype)


def prepare_params(params):
    """One-time parameter packing; do NOT rebuild this per forward call.

    * K/V weights fused into one (2H, 2H) matrix -> single MXU drain.
    * bq / bk / bv packed into one (2, 2H) tile -> one DMA / one VMEM tile.
    * 1/sqrt(H) softmax scale folded into Wq and bq -> no per-call score mul.
    """
    H = params["wq"].shape[0]
    scale = jnp.float32(H) ** -0.5
    wkv = jnp.concatenate([params["wk"], params["wv"]], axis=1)   # (2H, 2H)
    bias = jnp.zeros((2, 2 * H), jnp.float32)
    bias = bias.at[0, :H].set(params["bq"].reshape(-1) * scale)
    bias = bias.at[1, :H].set(params["bk"].reshape(-1))
    bias = bias.at[1, H:].set(params["bv"].reshape(-1))
    return {
        "wq_scaled": (params["wq"] * scale).astype(jnp.float32),
        "wkv": wkv.astype(jnp.float32),
        "bias": bias,
    }


@jax.jit
def stc_sorting_center_forward(xs, xt, packed):
    """Forward pass of SpatialTemporalCorrelationModel_SortingCenter.

    xs: (B, N, H) float32   -- query stream (spatial features)
    xt: (B, N, 2H) float32  -- key/value stream (temporal features)
    packed: output of prepare_params(params)  (cached, built once)
    """
    B, N, H = xs.shape
    assert xt.shape == (B, N, 2 * H)

    vmem = pl.BlockSpec(memory_space=pltpu.MemorySpace.VMEM)
    return pl.pallas_call(
        _attention_kernel,
        out_shape=jax.ShapeDtypeStruct((B, N, H), xs.dtype),
        # Single grid step (grid collapsed): whole arrays live in VMEM; at
        # these shapes everything fits with huge headroom.
        in_specs=[vmem] * 5,
        out_specs=vmem,
    )(xs, xt, packed["wq_scaled"], packed["wkv"], packed["bias"])


def init_params(hidden_channels, key):
    """Deterministic parameter init mirroring nn.Linear shapes.

    Linear(H  -> H): Wq (H, H),  bq (H,)
    Linear(2H -> H): Wk (2H, H), bk (H,)
    Linear(2H -> H): Wv (2H, H), bv (H,)
    Weights stored as (in_dim, out_dim) so forward is x @ W + b.
    """
    H = hidden_channels
    ks = jax.random.split(key, 6)

    def uniform(k, shape, fan_in):
        bound = 1.0 / jnp.sqrt(jnp.float32(fan_in))
        return jax.random.uniform(k, shape, jnp.float32, -bound, bound)

    return {
        "wq": uniform(ks[0], (H, H), H),
        "bq": uniform(ks[1], (H,), H),
        "wk": uniform(ks[2], (2 * H, H), 2 * H),
        "bk": uniform(ks[3], (H,), 2 * H),
        "wv": uniform(ks[4], (2 * H, H), 2 * H),
        "bv": uniform(ks[5], (H,), 2 * H),
    }


def reference_forward(xs, xt, params):
    """Plain-JAX reference (same math as the PyTorch module)."""
    q = xs @ params["wq"] + params["bq"]
    k = xt @ params["wk"] + params["bk"]
    v = xt @ params["wv"] + params["bv"]
    H = q.shape[-1]
    scores = jnp.einsum("bnh,bmh->bnm", q, k) / jnp.sqrt(jnp.float32(H))
    attn = jax.nn.softmax(scores, axis=-1)
    return jnp.einsum("bnm,bmh->bnh", attn, v)


if __name__ == "__main__":
    B, N, H = 2, 16, 32  # batch, number of sorting-center nodes, hidden_channels

    key = jax.random.PRNGKey(0)
    k_xs, k_xt, k_params = jax.random.split(key, 3)

    xs = jax.random.normal(k_xs, (B, N, H), jnp.float32)       # spatial features
    xt = jax.random.normal(k_xt, (B, N, 2 * H), jnp.float32)   # temporal features
    params = init_params(H, k_params)

    # One-time parameter packing (cached; outside the per-call hot path).
    packed = prepare_params(params)

    ref = reference_forward(xs, xt, params)

    out = jax.block_until_ready(stc_sorting_center_forward(xs, xt, packed))
    assert out.shape == (B, N, H)
    assert jnp.allclose(out, ref, atol=1e-4, rtol=1e-4), "mismatch vs reference"

    print("KERNEL_OK")
</pallas_src>

<mosaic_0001>
module attributes {stable_mosaic.version = 11 : i64} {
  func.func @_attention_kernel(%arg0: memref<2x16x32xf32, #tpu.memory_space<vmem>>, %arg1: memref<2x16x64xf32, #tpu.memory_space<vmem>>, %arg2: memref<32x32xf32, #tpu.memory_space<vmem>>, %arg3: memref<64x64xf32, #tpu.memory_space<vmem>>, %arg4: memref<2x64xf32, #tpu.memory_space<vmem>>, %arg5: memref<2x16x32xf32, #tpu.memory_space<vmem>>) attributes {dimension_semantics = [], scalar_prefetch = 0 : i64, scratch_operands = 0 : i64, tpu.core_type = #tpu.core_type<tc>} {
    %c0 = arith.constant 0 : index
    %c0_0 = arith.constant 0 : index
    %0 = vector.load %arg4[%c0, %c0_0] : memref<2x64xf32, #tpu.memory_space<vmem>>, vector<2x64xf32>
    %1 = vector.extract_strided_slice %0 {offsets = [0, 0], sizes = [1, 32], strides = [1, 1]} : vector<2x64xf32> to vector<1x32xf32>
    %2 = vector.extract_strided_slice %0 {offsets = [1, 0], sizes = [1, 64], strides = [1, 1]} : vector<2x64xf32> to vector<1x64xf32>
    %c0_1 = arith.constant 0 : index
    %c0_2 = arith.constant 0 : index
    %c0_3 = arith.constant 0 : index
    %3 = vector.load %arg0[%c0_1, %c0_2, %c0_3] : memref<2x16x32xf32, #tpu.memory_space<vmem>>, vector<2x16x32xf32>
    %4 = vector.shape_cast %3 : vector<2x16x32xf32> to vector<32x32xf32>
    %c0_4 = arith.constant 0 : index
    %c0_5 = arith.constant 0 : index
    %c0_6 = arith.constant 0 : index
    %5 = vector.load %arg1[%c0_4, %c0_5, %c0_6] : memref<2x16x64xf32, #tpu.memory_space<vmem>>, vector<2x16x64xf32>
    %6 = vector.shape_cast %5 : vector<2x16x64xf32> to vector<32x64xf32>
    %c0_7 = arith.constant 0 : index
    %c0_8 = arith.constant 0 : index
    %7 = vector.load %arg2[%c0_7, %c0_8] : memref<32x32xf32, #tpu.memory_space<vmem>>, vector<32x32xf32>
    %cst = arith.constant dense<0.000000e+00> : vector<32x32xf32>
    %8 = tpu.matmul %4, %7, %cst {dimension_numbers = #tpu.dot_dimension_numbers<[1], [0], [0], [1], [0, 0, 1, 1], [], []>} : vector<32x32xf32>, vector<32x32xf32>, vector<32x32xf32> -> vector<32x32xf32>
    %9 = vector.broadcast %1 : vector<1x32xf32> to vector<32x32xf32>
    %10 = arith.addf %8, %9 : vector<32x32xf32>
    %11 = vector.shape_cast %10 : vector<32x32xf32> to vector<2x16x32xf32>
    %c0_9 = arith.constant 0 : index
    %c0_10 = arith.constant 0 : index
    %12 = vector.load %arg3[%c0_9, %c0_10] : memref<64x64xf32, #tpu.memory_space<vmem>>, vector<64x64xf32>
    %cst_11 = arith.constant dense<0.000000e+00> : vector<32x64xf32>
    %13 = tpu.matmul %6, %12, %cst_11 {dimension_numbers = #tpu.dot_dimension_numbers<[1], [0], [0], [1], [0, 0, 1, 1], [], []>} : vector<32x64xf32>, vector<64x64xf32>, vector<32x64xf32> -> vector<32x64xf32>
    %14 = vector.broadcast %2 : vector<1x64xf32> to vector<32x64xf32>
    %15 = arith.addf %13, %14 : vector<32x64xf32>
    %16 = vector.extract_strided_slice %15 {offsets = [0, 0], sizes = [32, 32], strides = [1, 1]} : vector<32x64xf32> to vector<32x32xf32>
    %17 = vector.shape_cast %16 : vector<32x32xf32> to vector<2x16x32xf32>
    %18 = vector.extract_strided_slice %15 {offsets = [0, 32], sizes = [32, 32], strides = [1, 1]} : vector<32x64xf32> to vector<32x32xf32>
    %19 = vector.shape_cast %18 : vector<32x32xf32> to vector<2x16x32xf32>
    "tpu.trace_start"() <{level = 10 : i32, message = "bnh,bmh->bnm"}> : () -> ()
    %cst_12 = arith.constant dense<0.000000e+00> : vector<2x16x16xf32>
    %20 = tpu.matmul %11, %17, %cst_12 {dimension_numbers = #tpu.dot_dimension_numbers<[2], [2], [1], [1], [0, 0, 0, 1, 1, 1], [0], [0]>} : vector<2x16x32xf32>, vector<2x16x32xf32>, vector<2x16x16xf32> -> vector<2x16x16xf32>
    "tpu.trace_stop"() : () -> ()
    %cst_13 = arith.constant dense<0xFF800000> : vector<2x16xf32>
    %21 = vector.multi_reduction <maximumf>, %20, %cst_13 [2] : vector<2x16x16xf32> to vector<2x16xf32>
    %22 = vector.shape_cast %21 : vector<2x16xf32> to vector<2x16x1xf32>
    %23 = vector.broadcast %22 : vector<2x16x1xf32> to vector<2x16x16xf32>
    %24 = arith.subf %20, %23 : vector<2x16x16xf32>
    %25 = math.exp %24 : vector<2x16x16xf32>
    %cst_14 = arith.constant dense<0.000000e+00> : vector<2x16xf32>
    %26 = vector.multi_reduction <add>, %25, %cst_14 [2] : vector<2x16x16xf32> to vector<2x16xf32>
    %27 = vector.shape_cast %26 : vector<2x16xf32> to vector<2x16x1xf32>
    %28 = vector.broadcast %27 : vector<2x16x1xf32> to vector<2x16x16xf32>
    %29 = arith.divf %25, %28 : vector<2x16x16xf32>
    "tpu.trace_start"() <{level = 10 : i32, message = "bnm,bmh->bnh"}> : () -> ()
    %cst_15 = arith.constant dense<0.000000e+00> : vector<2x16x32xf32>
    %30 = tpu.matmul %29, %19, %cst_15 {dimension_numbers = #tpu.dot_dimension_numbers<[2], [1], [1], [2], [0, 0, 0, 1, 1, 2], [0], [0]>} : vector<2x16x16xf32>, vector<2x16x32xf32>, vector<2x16x32xf32> -> vector<2x16x32xf32>
    "tpu.trace_stop"() : () -> ()
    %c0_16 = arith.constant 0 : index
    %c0_17 = arith.constant 0 : index
    %c0_18 = arith.constant 0 : index
    %31 = vector.load %arg5[%c0_16, %c0_17, %c0_18] : memref<2x16x32xf32, #tpu.memory_space<vmem>>, vector<2x16x32xf32>
    tpu.vector_store %arg5[%c0_16, %c0_17, %c0_18], %30 {strides = array<i32>} : memref<2x16x32xf32, #tpu.memory_space<vmem>>, vector<2x16x32xf32>,
    return
  }
}

</mosaic_0001>

<llo_original>
// kernel: stc_sorting_center_forward.1
$region0: #{stc_sorting_center_forward.1}
  #allocation0 [shape = 'u32[]', space=smem, size = 0x4, offset = 0x4, fixed_abs, tag = 'smem constant byte address 0x4 - core index']
  #allocation1 [shape = 'u32[72,128]{1,0:T(1,128)}', space=vmem, size = 0x9000, scoped, tag = 'internal scratch']
  %s0 = inlined_call_operand.hbm [shape: f32[2,16,32], index: 0, kind: input, shape index: {}]
  %s1 = inlined_call_operand.hbm [shape: f32[2,16,64], index: 1, kind: input, shape index: {}]
  %s2 = inlined_call_operand.hbm [shape: f32[32,32], index: 2, kind: input, shape index: {}]
  %s3 = inlined_call_operand.hbm [shape: f32[64,64], index: 3, kind: input, shape index: {}]
  %s4 = inlined_call_operand.hbm [shape: f32[2,64], index: 4, kind: input, shape index: {}]
  %s5 = inlined_call_operand.hbm [shape: f32[2,16,32], index: 5, kind: output, shape index: {}]
  %s6 = sld [smem:[#allocation0]]
  $region50: #{stc_sorting_center_forward.1} parent=0
    _
  %s8 = ssub.s32 1, %s6
  %s9 = scalar_select 0, %s8, %s6
  $region1: #{stc_sorting_center_forward.1} parent=0
    #allocation2 [shape = 'u8[16384]{0}', space=vmem, size = 0x4000, scoped, tag = 'input window, operand 0, single buffered']
    #allocation3 [shape = 's32[1]{0}', space=sflag, size = 0x4, scoped, tag = 'scoped memory for stc_sorting_center_forward.1']
    #allocation4 [shape = 's32[1]{0}', space=sflag, size = 0x4, scoped, tag = 'scoped memory for stc_sorting_center_forward.1']
    #allocation5 [shape = 'u8[16384]{0}', space=vmem, size = 0x4000, scoped, tag = 'input window, operand 1, single buffered']
    #allocation6 [shape = 's32[1]{0}', space=sflag, size = 0x4, scoped, tag = 'scoped memory for stc_sorting_center_forward.1']
    #allocation7 [shape = 'u8[16384]{0}', space=vmem, size = 0x4000, scoped, tag = 'input window, operand 2, single buffered']
    #allocation8 [shape = 'u8[32768]{0}', space=vmem, size = 0x8000, scoped, tag = 'input window, operand 3, single buffered']
    #allocation9 [shape = 's32[1]{0}', space=sflag, size = 0x4, scoped, tag = 'scoped memory for stc_sorting_center_forward.1']
    #allocation10 [shape = 'u8[1024]{0}', space=vmem, size = 0x400, scoped, tag = 'input window, operand 4, single buffered']
    #allocation11 [shape = 'u8[16384]{0}', space=vmem, size = 0x4000, scoped, tag = 'output window, operand 0, single buffered']
    %10 = vsyncpa [#allocation3], 0
    %11 = vsyncpa [#allocation6], 0
    %12 = vsyncpa [#allocation9], 0
    %13 = vsyncpa [#allocation4], 0
    // Predicated region
    $region2: #{stc_sorting_center_forward.1} parent=1 // pred_check
      _
    $region3: #{stc_sorting_center_forward.1} parent=1 // pred_check_branch
      %15 = sbr.rel (0) target = $region5
    $region4: #{stc_sorting_center_forward.1} parent=1 // pred_region
      %17 = vsyncadd [#allocation3], 0
      %s18 = sshll.u32 %s0, 4
      %s19 = int_to_ptr.hbm [resolvable:$true] %s18
      %s20 = sshll.u32 [#allocation2], 4
      %s21 = int_to_ptr.vmem [resolvable:$true] %s20
      %26 = dma.hbm_to_vmem [thread:$0]  %s19, 512, %s21, [#allocation3], 128, 128, 8
    $region5: #{stc_sorting_center_forward.1} parent=1 // pred_fallthru
      _
    // Predicated region
    $region6: #{stc_sorting_center_forward.1} parent=1 // pred_check
      _
    $region7: #{stc_sorting_center_forward.1} parent=1 // pred_check_branch
      %28 = sbr.rel (0) target = $region9
    $region8: #{stc_sorting_center_forward.1} parent=1 // pred_region
      %30 = vsyncadd [#allocation6], 0
      %s31 = sshll.u32 %s1, 4
      %s32 = int_to_ptr.hbm [resolvable:$true] %s31
      %s33 = sshll.u32 [#allocation5], 4
      %s34 = int_to_ptr.vmem [resolvable:$true] %s33
      %39 = dma.hbm_to_vmem [thread:$0]  %s32, 512, %s34, [#allocation6], 128, 128, 8
    $region9: #{stc_sorting_center_forward.1} parent=1 // pred_fallthru
      _
    // Predicated region
    $region10: #{stc_sorting_center_forward.1} parent=1 // pred_check
      _
    $region11: #{stc_sorting_center_forward.1} parent=1 // pred_check_branch
      %41 = sbr.rel (0) target = $region13
    $region12: #{stc_sorting_center_forward.1} parent=1 // pred_region
      %43 = vsyncadd [#allocation6], 0
      %s44 = sshll.u32 %s2, 4
      %s45 = int_to_ptr.hbm [resolvable:$true] %s44
      %s46 = sshll.u32 [#allocation7], 4
      %s47 = int_to_ptr.vmem [resolvable:$true] %s46
      %52 = dma.hbm_to_vmem [thread:$0]  %s45, 512, %s47, [#allocation6], 128, 128, 8
    $region13: #{stc_sorting_center_forward.1} parent=1 // pred_fallthru
      _
    // Predicated region
    $region14: #{stc_sorting_center_forward.1} parent=1 // pred_check
      _
    $region15: #{stc_sorting_center_forward.1} parent=1 // pred_check_branch
      %54 = sbr.rel (0) target = $region17
    $region16: #{stc_sorting_center_forward.1} parent=1 // pred_region
      %56 = vsyncadd [#allocation9], 0
      %s57 = sshll.u32 %s3, 4
      %s58 = int_to_ptr.hbm [resolvable:$true] %s57
      %s59 = sshll.u32 [#allocation8], 4
      %s60 = int_to_ptr.vmem [resolvable:$true] %s59
      %65 = dma.hbm_to_vmem [thread:$0]  %s58, 1024, %s60, [#allocation9], 128, 128, 8
    $region17: #{stc_sorting_center_forward.1} parent=1 // pred_fallthru
      _
    // Predicated region
    $region18: #{stc_sorting_center_forward.1} parent=1 // pred_check
      _
    $region19: #{stc_sorting_center_forward.1} parent=1 // pred_check_branch
      %67 = sbr.rel (0) target = $region21
    $region20: #{stc_sorting_center_forward.1} parent=1 // pred_region
      %69 = vsyncadd [#allocation9], 0
      %s71 = sshll.u32 %s4, 4
      %s72 = int_to_ptr.hbm [resolvable:$true] %s71
      %s73 = sshll.u32 [#allocation10], 4
      %s74 = int_to_ptr.vmem [resolvable:$true] %s73
      %76 = dma.hbm_to_vmem [thread:$0]  %s72, 32, %s74, [#allocation9]
    $region21: #{stc_sorting_center_forward.1} parent=1 // pred_fallthru
      _
    // Predicated region
    $region22: #{stc_sorting_center_forward.1} parent=1 // pred_check
      _
    $region23: #{stc_sorting_center_forward.1} parent=1 // pred_check_branch
      %78 = sbr.rel (0) target = $region25
    $region24: #{stc_sorting_center_forward.1} parent=1 // pred_region
      %80 = dma.done [#allocation3], 512
    $region25: #{stc_sorting_center_forward.1} parent=1 // pred_fallthru
      _
    // Predicated region
    $region26: #{stc_sorting_center_forward.1} parent=1 // pred_check
      _
    $region27: #{stc_sorting_center_forward.1} parent=1 // pred_check_branch
      %82 = sbr.rel (0) target = $region29
    $region28: #{stc_sorting_center_forward.1} parent=1 // pred_region
      %84 = dma.done [#allocation6], 512
    $region29: #{stc_sorting_center_forward.1} parent=1 // pred_fallthru
      _
    // Predicated region
    $region30: #{stc_sorting_center_forward.1} parent=1 // pred_check
      _
    $region31: #{stc_sorting_center_forward.1} parent=1 // pred_check_branch
      %86 = sbr.rel (0) target = $region33
    $region32: #{stc_sorting_center_forward.1} parent=1 // pred_region
      %88 = dma.done [#allocation6], 512
    $region33: #{stc_sorting_center_forward.1} parent=1 // pred_fallthru
      _
    // Predicated region
    $region34: #{stc_sorting_center_forward.1} parent=1 // pred_check
      _
    $region35: #{stc_sorting_center_forward.1} parent=1 // pred_check_branch
      %90 = sbr.rel (0) target = $region37
    $region36: #{stc_sorting_center_forward.1} parent=1 // pred_region
      %92 = dma.done [#allocation9], 1024
    $region37: #{stc_sorting_center_forward.1} parent=1 // pred_fallthru
      _
    // Predicated region
    $region38: #{stc_sorting_center_forward.1} parent=1 // pred_check
      _
    $region39: #{stc_sorting_center_forward.1} parent=1 // pred_check_branch
      %94 = sbr.rel (0) target = $region41
    $region40: #{stc_sorting_center_forward.1} parent=1 // pred_region
      %96 = dma.done [#allocation9], 32
    $region41: #{stc_sorting_center_forward.1} parent=1 // pred_fallthru
      _
    %v97 = vld [vmem:[#allocation10] sm:$0x3]
    %v98 = vld [vmem:[#allocation2] sm:$0xff]
    %v99 = vld [vmem:[#allocation2 + $0x8] sm:$0xff]
    %v100 = vld [vmem:[#allocation2 + $0x10] sm:$0xff]
    %v101 = vld [vmem:[#allocation2 + $0x18] sm:$0xff]
    %v102 = vld [vmem:[#allocation5] sm:$0xff]
    %v103 = vld [vmem:[#allocation5 + $0x8] sm:$0xff]
    %v104 = vld [vmem:[#allocation5 + $0x10] sm:$0xff]
    %v105 = vld [vmem:[#allocation5 + $0x18] sm:$0xff]
    %v106 = vld [vmem:[#allocation7] sm:$0xff]
    %v107 = vld [vmem:[#allocation7 + $0x8] sm:$0xff]
    %v108 = vld [vmem:[#allocation7 + $0x10] sm:$0xff]
    %v109 = vld [vmem:[#allocation7 + $0x18] sm:$0xff]
    %v110 = vperm.slane %v97, 0
    %vm111 = vcmask 261120
    %v113 = vsel %vm111, %v98, 0
    %v116 = vsel %vm111, %v99, 0
    %v119 = vsel %vm111, %v100, 0
    %v122 = vsel %vm111, %v101, 0
    %124 = vmatpush.msra.mxu0 0.0
    %125 = vmatpush.msra.mxu0 0.0
    %126 = vmatpush.msra.mxu0 0.0
    %127 = vmatpush.msra.mxu0 0.0
    %128 = vmatpush.msra.mxu0 0.0
    %129 = vmatpush.msra.mxu0 0.0
    %130 = vmatpush.msra.mxu0 0.0
    %131 = vmatpush.msra.mxu0 0.0
    %132 = vmatpush.msra.mxu0 0.0
    %133 = vmatpush.msra.mxu0 0.0
    %134 = vmatpush.msra.mxu0 0.0
    %135 = vmatpush.msra.mxu0 0.0
    %136 = vmatpush.msra.mxu0 %v109
    %137 = vmatpush.msra.mxu0 %v108
    %138 = vmatpush.msra.mxu0 %v107
    %139 = vmatpush.msra.mxu0 %v106
    %140 = vmatmul.f32.gmra.mxu0 %v113
    %v141 = vpop.f32.mrf.mxu0
    %v142 = vadd.f32 %v110, %v141
    %143 = vmatmul.f32.gmra.mxu0 %v116
    %v144 = vpop.f32.mrf.mxu0
    %v145 = vadd.f32 %v110, %v144
    %146 = vmatmul.f32.gmra.mxu0 %v119
    %v147 = vpop.f32.mrf.mxu0
    %v148 = vadd.f32 %v110, %v147
    %149 = vmatmul.f32.gmra.mxu0 %v122
    %v150 = vpop.f32.mrf.mxu0
    %v151 = vadd.f32 %v110, %v150
    %152 = vdwg.mxu0
    %v153 = vld [vmem:[#allocation8] sm:$0xff]
    %v154 = vld [vmem:[#allocation8 + $0x8] sm:$0xff]
    %v155 = vld [vmem:[#allocation8 + $0x10] sm:$0xff]
    %v156 = vld [vmem:[#allocation8 + $0x18] sm:$0xff]
    %v157 = vld [vmem:[#allocation8 + $0x20] sm:$0xff]
    %v158 = vld [vmem:[#allocation8 + $0x28] sm:$0xff]
    %v159 = vld [vmem:[#allocation8 + $0x30] sm:$0xff]
    %v160 = vld [vmem:[#allocation8 + $0x38] sm:$0xff]
    %v161 = vperm.slane %v97, 1
    %vm162 = vcmask 523264
    %v164 = vsel %vm162, %v102, 0
    %v167 = vsel %vm162, %v103, 0
    %v170 = vsel %vm162, %v104, 0
    %v173 = vsel %vm162, %v105, 0
    %175 = vmatpush.msra.mxu0 0.0
    %176 = vmatpush.msra.mxu0 0.0
    %177 = vmatpush.msra.mxu0 0.0
    %178 = vmatpush.msra.mxu0 0.0
    %179 = vmatpush.msra.mxu0 0.0
    %180 = vmatpush.msra.mxu0 0.0
    %181 = vmatpush.msra.mxu0 0.0
    %182 = vmatpush.msra.mxu0 0.0
    %183 = vmatpush.msra.mxu0 %v160
    %184 = vmatpush.msra.mxu0 %v159
    %185 = vmatpush.msra.mxu0 %v158
    %186 = vmatpush.msra.mxu0 %v157
    %187 = vmatpush.msra.mxu0 %v156
    %188 = vmatpush.msra.mxu0 %v155
    %189 = vmatpush.msra.mxu0 %v154
    %190 = vmatpush.msra.mxu0 %v153
    %191 = vmatmul.f32.gmra.mxu0 %v164
    %v192 = vpop.f32.mrf.mxu0
    %v193 = vadd.f32 %v161, %v192
    %194 = vmatmul.f32.gmra.mxu0 %v167
    %v195 = vpop.f32.mrf.mxu0
    %v196 = vadd.f32 %v161, %v195
    %197 = vmatmul.f32.gmra.mxu0 %v170
    %v198 = vpop.f32.mrf.mxu0
    %v199 = vadd.f32 %v161, %v198
    %200 = vmatmul.f32.gmra.mxu0 %v173
    %v201 = vpop.f32.mrf.mxu0
    %v202 = vadd.f32 %v161, %v201
    %203 = vdwg.mxu0
    %v205 = vsel %vm111, %v142, 0
    %v208 = vsel %vm111, %v145, 0
    %v211 = vsel %vm111, %v193, 0
    %v214 = vsel %vm111, %v196, 0
    %216 = vmatpush.xpose.msra.mxu0 0.0
    %217 = vmatpush.xpose.msra.mxu0 0.0
    %218 = vmatpush.xpose.msra.mxu0 0.0
    %219 = vmatpush.xpose.msra.mxu0 0.0
    %220 = vmatpush.xpose.msra.mxu0 0.0
    %221 = vmatpush.xpose.msra.mxu0 0.0
    %222 = vmatpush.xpose.msra.mxu0 0.0
    %223 = vmatpush.xpose.msra.mxu0 0.0
    %224 = vmatpush.xpose.msra.mxu0 0.0
    %225 = vmatpush.xpose.msra.mxu0 0.0
    %226 = vmatpush.xpose.msra.mxu0 0.0
    %227 = vmatpush.xpose.msra.mxu0 0.0
    %228 = vmatpush.xpose.msra.mxu0 0.0
    %229 = vmatpush.xpose.msra.mxu0 0.0
    %230 = vmatpush.xpose.msra.mxu0 %v214
    %231 = vmatpush.xpose.msra.mxu0 %v211
    %232 = vmatmul.f32.gmra.mxu0 %v205
    %v233 = vpop.f32.mrf.mxu0
    %v234 = vadd.f32 0.0, %v233
    %235 = vmatmul.f32.gmra.mxu0 %v208
    %v236 = vpop.f32.mrf.mxu0
    %v237 = vadd.f32 0.0, %v236
    %238 = vdwg.mxu0
    %v240 = vsel %vm111, %v148, 0
    %v243 = vsel %vm111, %v151, 0
    %v246 = vsel %vm111, %v199, 0
    %v249 = vsel %vm111, %v202, 0
    %251 = vmatpush.xpose.msra.mxu0 0.0
    %252 = vmatpush.xpose.msra.mxu0 0.0
    %253 = vmatpush.xpose.msra.mxu0 0.0
    %254 = vmatpush.xpose.msra.mxu0 0.0
    %255 = vmatpush.xpose.msra.mxu0 0.0
    %256 = vmatpush.xpose.msra.mxu0 0.0
    %257 = vmatpush.xpose.msra.mxu0 0.0
    %258 = vmatpush.xpose.msra.mxu0 0.0
    %259 = vmatpush.xpose.msra.mxu0 0.0
    %260 = vmatpush.xpose.msra.mxu0 0.0
    %261 = vmatpush.xpose.msra.mxu0 0.0
    %262 = vmatpush.xpose.msra.mxu0 0.0
    %263 = vmatpush.xpose.msra.mxu0 0.0
    %264 = vmatpush.xpose.msra.mxu0 0.0
    %265 = vmatpush.xpose.msra.mxu0 %v249
    %266 = vmatpush.xpose.msra.mxu0 %v246
    %267 = vmatmul.f32.gmra.mxu0 %v240
    %v268 = vpop.f32.mrf.mxu0
    %v269 = vadd.f32 0.0, %v268
    %270 = vmatmul.f32.gmra.mxu0 %v243
    %v271 = vpop.f32.mrf.mxu0
    %v272 = vadd.f32 0.0, %v271
    %273 = vdwg.mxu0
    %vm274 = vcmask 130048
    %v275 = vsel %vm274, %v234, -inf
    %276 = vmax.xlane.f32.xlu0 %v275
    %v277 = vpop.xlane.xlu0 %276
    %v278 = vsel %vm274, %v237, -inf
    %279 = vmax.xlane.f32.xlu0 %v278
    %v280 = vpop.xlane.xlu0 %279
    %v281 = vsel %vm274, %v269, -inf
    %282 = vmax.xlane.f32.xlu0 %v281
    %v283 = vpop.xlane.xlu0 %282
    %v284 = vsel %vm274, %v272, -inf
    %285 = vmax.xlane.f32.xlu0 %v284
    %v286 = vpop.xlane.xlu0 %285
    %v287 = vsub.f32 %v234, %v277
    %v288 = vsub.f32 %v237, %v280
    %v289 = vsub.f32 %v269, %v283
    %v290 = vsub.f32 %v272, %v286
    %v291 = vmul.f32 %v287, 1.442695
    %v292 = vpow.pop %v291
    %v293 = vmul.f32 %v288, 1.442695
    %v294 = vpow.pop %v293
    %v295 = vmul.f32 %v289, 1.442695
    %v296 = vpow.pop %v295
    %v297 = vmul.f32 %v290, 1.442695
    %v298 = vpow.pop %v297
    %v299 = vsel %vm274, %v292, 0.0
    %300 = vadd.xlane.f32.xlu0 %v299
    %v301 = vpop.xlane.xlu0 %300
    %v302 = vsel %vm274, %v294, 0.0
    %303 = vadd.xlane.f32.xlu0 %v302
    %v304 = vpop.xlane.xlu0 %303
    %v305 = vsel %vm274, %v296, 0.0
    %306 = vadd.xlane.f32.xlu0 %v305
    %v307 = vpop.xlane.xlu0 %306
    %v308 = vsel %vm274, %v298, 0.0
    %309 = vadd.xlane.f32.xlu0 %v308
    %v310 = vpop.xlane.xlu0 %309
    %v311 = vrcp.pop %v301
    %v312 = vmul.f32 %v301, %v311
    %v313 = vsub.f32 1.0, %v312
    %v314 = vmul.f32 %v311, %v313
    %v315 = vadd.f32 %v311, %v314
    %vm316 = vweird.f32 %v301
    %vm317 = vweird.f32 %v311
    %vm318 = vmor %vm316, %vm317
    %v319 = vsel %vm318, %v311, %v315
    %v320 = vand.u32 2147483647, %v301
    %vm321 = vcmp.eq.f32.partialorder %v320, 8.507059e+37
    %v322 = vand.u32 %v301, 2147483648
    %v323 = vor.u32 1.1754944e-38, %v322
    %v324 = vsel %vm321, %v323, %v319
    %v325 = vmul.f32 %v292, %v324
    %v326 = vrcp.pop %v304
    %v327 = vmul.f32 %v304, %v326
    %v328 = vsub.f32 1.0, %v327
    %v329 = vmul.f32 %v326, %v328
    %v330 = vadd.f32 %v326, %v329
    %vm331 = vweird.f32 %v304
    %vm332 = vweird.f32 %v326
    %vm333 = vmor %vm331, %vm332
    %v334 = vsel %vm333, %v326, %v330
    %v335 = vand.u32 2147483647, %v304
    %vm336 = vcmp.eq.f32.partialorder %v335, 8.507059e+37
    %v337 = vand.u32 %v304, 2147483648
    %v338 = vor.u32 1.1754944e-38, %v337
    %v339 = vsel %vm336, %v338, %v334
    %v340 = vmul.f32 %v294, %v339
    %v341 = vrcp.pop %v307
    %v342 = vmul.f32 %v307, %v341
    %v343 = vsub.f32 1.0, %v342
    %v344 = vmul.f32 %v341, %v343
    %v345 = vadd.f32 %v341, %v344
    %vm346 = vweird.f32 %v307
    %vm347 = vweird.f32 %v341
    %vm348 = vmor %vm346, %vm347
    %v349 = vsel %vm348, %v341, %v345
    %v350 = vand.u32 2147483647, %v307
    %vm351 = vcmp.eq.f32.partialorder %v350, 8.507059e+37
    %v352 = vand.u32 %v307, 2147483648
    %v353 = vor.u32 1.1754944e-38, %v352
    %v354 = vsel %vm351, %v353, %v349
    %v355 = vmul.f32 %v296, %v354
    %v356 = vrcp.pop %v310
    %v357 = vmul.f32 %v310, %v356
    %v358 = vsub.f32 1.0, %v357
    %v359 = vmul.f32 %v356, %v358
    %v360 = vadd.f32 %v356, %v359
    %vm361 = vweird.f32 %v310
    %vm362 = vweird.f32 %v356
    %vm363 = vmor %vm361, %vm362
    %v364 = vsel %vm363, %v356, %v360
    %v365 = vand.u32 2147483647, %v310
    %vm366 = vcmp.eq.f32.partialorder %v365, 8.507059e+37
    %v367 = vand.u32 %v310, 2147483648
    %v368 = vor.u32 1.1754944e-38, %v367
    %v369 = vsel %vm366, %v368, %v364
    %v370 = vmul.f32 %v298, %v369
    %371 = vrot.lane.b32.xlu0 %v193, 96
    %v372 = vpop.permute.xlu0 %371
    %373 = vrot.lane.b32.xlu0 %v196, 96
    %v374 = vpop.permute.xlu0 %373
    %v378 = vsel %vm274, %v325, 0
    %v381 = vsel %vm274, %v340, 0
    %383 = vmatpush.msra.mxu0 0.0
    %384 = vmatpush.msra.mxu0 0.0
    %385 = vmatpush.msra.mxu0 0.0
    %386 = vmatpush.msra.mxu0 0.0
    %387 = vmatpush.msra.mxu0 0.0
    %388 = vmatpush.msra.mxu0 0.0
    %389 = vmatpush.msra.mxu0 0.0
    %390 = vmatpush.msra.mxu0 0.0
    %391 = vmatpush.msra.mxu0 0.0
    %392 = vmatpush.msra.mxu0 0.0
    %393 = vmatpush.msra.mxu0 0.0
    %394 = vmatpush.msra.mxu0 0.0
    %395 = vmatpush.msra.mxu0 0.0
    %396 = vmatpush.msra.mxu0 0.0
    %397 = vmatpush.msra.mxu0 %v374
    %398 = vmatpush.msra.mxu0 %v372
    %399 = vmatmul.f32.gmra.mxu0 %v378
    %v400 = vpop.f32.mrf.mxu0
    %v401 = vadd.f32 0.0, %v400
    %402 = vmatmul.f32.gmra.mxu0 %v381
    %v403 = vpop.f32.mrf.mxu0
    %v404 = vadd.f32 0.0, %v403
    %405 = vdwg.mxu0
    %406 = vrot.lane.b32.xlu0 %v199, 96
    %v407 = vpop.permute.xlu0 %406
    %408 = vrot.lane.b32.xlu0 %v202, 96
    %v409 = vpop.permute.xlu0 %408
    %v413 = vsel %vm274, %v355, 0
    %v416 = vsel %vm274, %v370, 0
    %418 = vmatpush.msra.mxu0 0.0
    %419 = vmatpush.msra.mxu0 0.0
    %420 = vmatpush.msra.mxu0 0.0
    %421 = vmatpush.msra.mxu0 0.0
    %422 = vmatpush.msra.mxu0 0.0
    %423 = vmatpush.msra.mxu0 0.0
    %424 = vmatpush.msra.mxu0 0.0
    %425 = vmatpush.msra.mxu0 0.0
    %426 = vmatpush.msra.mxu0 0.0
    %427 = vmatpush.msra.mxu0 0.0
    %428 = vmatpush.msra.mxu0 0.0
    %429 = vmatpush.msra.mxu0 0.0
    %430 = vmatpush.msra.mxu0 0.0
    %431 = vmatpush.msra.mxu0 0.0
    %432 = vmatpush.msra.mxu0 %v409
    %433 = vmatpush.msra.mxu0 %v407
    %434 = vmatmul.f32.gmra.mxu0 %v413
    %v435 = vpop.f32.mrf.mxu0
    %v436 = vadd.f32 0.0, %v435
    %437 = vmatmul.f32.gmra.mxu0 %v416
    %v438 = vpop.f32.mrf.mxu0
    %v439 = vadd.f32 0.0, %v438
    %440 = vdwg.mxu0
    %441 = vst.msk [vmem:[#allocation11] sm:$0xff] %vm111, %v401
    %442 = vst.msk [vmem:[#allocation11 + $0x8] sm:$0xff] %vm111, %v404
    %443 = vst.msk [vmem:[#allocation11 + $0x10] sm:$0xff] %vm111, %v436
    %444 = vst.msk [vmem:[#allocation11 + $0x18] sm:$0xff] %vm111, %v439
    // Predicated region
    $region42: #{stc_sorting_center_forward.1} parent=1 // pred_check
      _
    $region43: #{stc_sorting_center_forward.1} parent=1 // pred_check_branch
      %446 = sbr.rel (0) target = $region45
    $region44: #{stc_sorting_center_forward.1} parent=1 // pred_region
      %448 = vsyncadd [#allocation4], 0
      %s449 = sshll.u32 [#allocation11], 4
      %s450 = int_to_ptr.vmem [resolvable:$true] %s449
      %s451 = sshll.u32 %s5, 4
      %s452 = int_to_ptr.hbm [resolvable:$true] %s451
      %457 = dma.vmem_to_hbm [thread:$0]  %s450, 512, %s452, [#allocation4], 128, 128, 8
    $region45: #{stc_sorting_center_forward.1} parent=1 // pred_fallthru
      _
    // Predicated region
    $region46: #{stc_sorting_center_forward.1} parent=1 // pred_check
      _
    $region47: #{stc_sorting_center_forward.1} parent=1 // pred_check_branch
      %459 = sbr.rel (0) target = $region49
    $region48: #{stc_sorting_center_forward.1} parent=1 // pred_region
      %461 = dma.done [#allocation4], 512
    $region49: #{stc_sorting_center_forward.1} parent=1 // pred_fallthru
      _
    %462 = vsyncpa [#allocation3], 1
    %463 = vsyncpa [#allocation6], 1
    %464 = vsyncpa [#allocation9], 1
    %465 = vsyncpa [#allocation4], 1

</llo_original>
